<compile_context>
chip_gen: v5e
topology: v5e:2x2
jax: 0.10.0
libtpu: 0.0.40
codegen_flags: <defaults>
</compile_context>

<pallas_src>
import jax
import jax.numpy as jnp
from jax.experimental import pallas as pl
from jax.experimental.pallas import tpu as pltpu


def linear_kernel(x_ref, w_ref, b_ref, o_ref):
    # x_ref: (TB, IN) f32 in VMEM
    # w_ref: (OUT=1, IN) f32 in VMEM   (PyTorch nn.Linear layout, no transpose)
    # b_ref: (OUT=1,)  f32 in SMEM     (scalar bias)
    # o_ref: (TB, OUT=1) f32 in VMEM
    b = b_ref[0]                                   # scalar SMEM read, off the vector path
    x = x_ref[...]                                 # (TB, IN)
    w = w_ref[...]                                 # (1, IN) -> broadcasts over TB
    y = jnp.sum(x * w, axis=-1, keepdims=True)     # VPU mul + XLU lane reduce -> (TB, 1)
    o_ref[...] = y + b                             # scalar bias broadcast add (f32 == f32)


# Batch tile for the scaled path: multiple of 8, in the 512-2048 sweet spot.
_TILE_B = 512


def _linear_pallas_gridless(x, weight, bias):
    """Small-B path: whole arrays resident in VMEM, no grid, no pipelining."""
    B, _ = x.shape
    OUT = weight.shape[0]
    return pl.pallas_call(
        linear_kernel,
        out_shape=jax.ShapeDtypeStruct((B, OUT), x.dtype),
        in_specs=[
            pl.BlockSpec(memory_space=pltpu.MemorySpace.VMEM),   # x, whole array
            pl.BlockSpec(memory_space=pltpu.MemorySpace.VMEM),   # weight, whole array
            pl.BlockSpec(memory_space=pltpu.MemorySpace.SMEM),   # bias scalar
        ],
        out_specs=pl.BlockSpec(memory_space=pltpu.MemorySpace.VMEM),
    )(x, weight, bias)


def _linear_pallas_tiled(x, weight, bias, tile_b=_TILE_B):
    """Large-B path: 1-D parallel grid over the batch (amortizes per-call cost,
    shards the batch across TensorCores on v7x, keeps VMEM footprint bounded)."""
    B, IN = x.shape
    OUT = weight.shape[0]
    assert B % tile_b == 0 and tile_b % 8 == 0
    return pl.pallas_call(
        linear_kernel,
        out_shape=jax.ShapeDtypeStruct((B, OUT), x.dtype),
        grid=(B // tile_b,),
        in_specs=[
            pl.BlockSpec((tile_b, IN), lambda i: (i, 0)),        # x tile
            pl.BlockSpec((OUT, IN), lambda i: (0, 0)),           # weight (resident)
            pl.BlockSpec(memory_space=pltpu.MemorySpace.SMEM),   # bias scalar
        ],
        out_specs=pl.BlockSpec((tile_b, OUT), lambda i: (i, 0)),
        compiler_params=pltpu.CompilerParams(
            dimension_semantics=("parallel",),
        ),
    )(x, weight, bias)


def linear_pallas(x, weight, bias):
    """x: (B, IN) f32, weight: (OUT, IN) f32 (PyTorch layout), bias: (OUT,) f32."""
    B, _ = x.shape
    OUT = weight.shape[0]
    assert OUT == 1, "VPU-reduction path is specialized for nn.Linear(10, 1) (OUT == 1)"
    if B >= 2 * _TILE_B and B % _TILE_B == 0:
        return _linear_pallas_tiled(x, weight, bias)
    return _linear_pallas_gridless(x, weight, bias)


if __name__ == "__main__":
    key = jax.random.PRNGKey(0)
    kx, kw, kb, kx2 = jax.random.split(key, 4)

    B, IN, OUT = 8, 10, 1
    # Deterministic parameter init (mimics nn.Linear uniform(-1/sqrt(IN), 1/sqrt(IN)))
    bound = 1.0 / (IN ** 0.5)
    weight = jax.random.uniform(kw, (OUT, IN), jnp.float32, -bound, bound)
    bias = jax.random.uniform(kb, (OUT,), jnp.float32, -bound, bound)

    # Primary (module-natural) shape: B = 8 -> gridless path.
    x = jax.random.normal(kx, (B, IN), jnp.float32)
    y = linear_pallas(x, weight, bias)
    jax.block_until_ready(y)
    y_ref = x @ weight.T + bias
    assert y.shape == (B, OUT)
    assert jnp.allclose(y, y_ref, atol=1e-5, rtol=1e-5), "mismatch vs reference (gridless)"

    # Scaled-batch sanity check: exercises the parallel-grid path from the review.
    B_big = 1024
    x_big = jax.random.normal(kx2, (B_big, IN), jnp.float32)
    y_big = linear_pallas(x_big, weight, bias)
    jax.block_until_ready(y_big)
    y_big_ref = x_big @ weight.T + bias
    assert y_big.shape == (B_big, OUT)
    assert jnp.allclose(y_big, y_big_ref, atol=1e-5, rtol=1e-5), "mismatch vs reference (tiled)"

    print("KERNEL_OK")
</pallas_src>

<mosaic_0001>
module attributes {stable_mosaic.version = 11 : i64} {
  func.func @linear_kernel(%arg0: memref<8x10xf32, #tpu.memory_space<vmem>>, %arg1: memref<1x10xf32, #tpu.memory_space<vmem>>, %arg2: memref<1xf32, #tpu.memory_space<smem>>, %arg3: memref<8x1xf32, #tpu.memory_space<vmem>>) attributes {dimension_semantics = [], scalar_prefetch = 0 : i64, scratch_operands = 0 : i64, tpu.core_type = #tpu.core_type<tc>} {
    %c0 = arith.constant 0 : index
    %0 = memref.load %arg2[%c0] : memref<1xf32, #tpu.memory_space<smem>>
    %c0_0 = arith.constant 0 : index
    %c0_1 = arith.constant 0 : index
    %1 = vector.load %arg0[%c0_0, %c0_1] : memref<8x10xf32, #tpu.memory_space<vmem>>, vector<8x10xf32>
    %c0_2 = arith.constant 0 : index
    %c0_3 = arith.constant 0 : index
    %2 = vector.load %arg1[%c0_2, %c0_3] : memref<1x10xf32, #tpu.memory_space<vmem>>, vector<1x10xf32>
    %3 = vector.broadcast %2 : vector<1x10xf32> to vector<8x10xf32>
    %4 = arith.mulf %1, %3 : vector<8x10xf32>
    %cst = arith.constant dense<0.000000e+00> : vector<8xf32>
    %5 = vector.multi_reduction <add>, %4, %cst [1] : vector<8x10xf32> to vector<8xf32>
    %6 = vector.shape_cast %5 : vector<8xf32> to vector<8x1xf32>
    %7 = vector.broadcast %0 : f32 to vector<8x1xf32>
    %8 = arith.addf %6, %7 : vector<8x1xf32>
    %c0_4 = arith.constant 0 : index
    %c0_5 = arith.constant 0 : index
    %9 = vector.load %arg3[%c0_4, %c0_5] : memref<8x1xf32, #tpu.memory_space<vmem>>, vector<8x1xf32>
    tpu.vector_store %arg3[%c0_4, %c0_5], %8 {strides = array<i32>} : memref<8x1xf32, #tpu.memory_space<vmem>>, vector<8x1xf32>,
    return
  }
}

</mosaic_0001>

<llo_original>
// kernel: tpu_custom_call.1
$region0: #{tpu_custom_call.1}
  #allocation0 [shape = 'u32[]', space=smem, size = 0x4, offset = 0x4, fixed_abs, tag = 'smem constant byte address 0x4 - core index']
  #allocation1 [shape = 'u32[72,128]{1,0:T(1,128)}', space=vmem, size = 0x9000, scoped, tag = 'internal scratch']
  #allocation2 [shape = 'f32[1]{0:T(128)S(6)}', space=smem, size = 0x200, scoped, tag = 'scoped memory for tpu_custom_call.1']
  %s0 = inlined_call_operand.hbm [shape: f32[8,10], index: 0, kind: input, shape index: {}]
  %s1 = inlined_call_operand.vmem [shape: f32[1,10], index: 1, kind: input, shape index: {}]
  %s2 = inlined_call_operand.<no memory space> [shape: f32[1], index: 2, kind: input, shape index: {}]
  %s3 = inlined_call_operand.vmem [shape: f32[8,1], index: 3, kind: output, shape index: {}]
  %s4 = sld [smem:[#allocation0]]
  $region26: #{tpu_custom_call.1} parent=0
    _
  %s6 = ssub.s32 1, %s4
  %s7 = scalar_select 0, %s6, %s4
  %8 = sst [smem:[#allocation2]] %s2
  $region1: #{tpu_custom_call.1} parent=0
    #allocation3 [shape = 'u8[4096]{0}', space=vmem, size = 0x1000, scoped, tag = 'input window, operand 0, single buffered']
    #allocation4 [shape = 's32[1]{0}', space=sflag, size = 0x4, scoped, tag = 'scoped memory for tpu_custom_call.1']
    %9 = vsyncpa [#allocation4], 0
    // Predicated region
    $region2: #{tpu_custom_call.1} parent=1 // pred_check
      _
    $region3: #{tpu_custom_call.1} parent=1 // pred_check_branch
      %11 = sbr.rel (0) target = $region5
    $region4: #{tpu_custom_call.1} parent=1 // pred_region
      %13 = vsyncadd [#allocation4], 0
      %s15 = sshll.u32 %s0, 4
      %s16 = int_to_ptr.hbm [resolvable:$true] %s15
      %s17 = sshll.u32 [#allocation3], 4
      %s18 = int_to_ptr.vmem [resolvable:$true] %s17
      %20 = dma.hbm_to_vmem [thread:$0]  %s16, 128, %s18, [#allocation4]
    $region5: #{tpu_custom_call.1} parent=1 // pred_fallthru
      _
    // Predicated region
    $region6: #{tpu_custom_call.1} parent=1 // pred_check
      _
    $region7: #{tpu_custom_call.1} parent=1 // pred_check_branch
      %22 = sbr.rel (0) target = $region9
    $region8: #{tpu_custom_call.1} parent=1 // pred_region
      _
    $region9: #{tpu_custom_call.1} parent=1 // pred_fallthru
      _
    // Predicated region
    $region10: #{tpu_custom_call.1} parent=1 // pred_check
      _
    $region11: #{tpu_custom_call.1} parent=1 // pred_check_branch
      %24 = sbr.rel (0) target = $region13
    $region12: #{tpu_custom_call.1} parent=1 // pred_region
      _
    $region13: #{tpu_custom_call.1} parent=1 // pred_fallthru
      _
    // Predicated region
    $region14: #{tpu_custom_call.1} parent=1 // pred_check
      _
    $region15: #{tpu_custom_call.1} parent=1 // pred_check_branch
      %26 = sbr.rel (0) target = $region17
    $region16: #{tpu_custom_call.1} parent=1 // pred_region
      %28 = dma.done [#allocation4], 128
    $region17: #{tpu_custom_call.1} parent=1 // pred_fallthru
      _
    %s29 = sld [smem:[#allocation2]]
    %v30 = vld [vmem:[#allocation3] sm:$0xff]
    %v31 = vld [vmem:[%s1] sm:$0x1]
    %v33 = vperm.slane %v31, 0
    %v35 = vmul.f32 %v30, %v33
    %vm36 = vcmask 80896
    %v37 = vsel %vm36, %v35, 0.0
    %38 = vadd.xlane.f32.xlu0 %v37
    %v39 = vpop.xlane.xlu0 %38
    %v40 = vstv %s29
    %v41 = vadd.f32 %v39, %v40
    %vm42 = vcmask 7168
    %43 = vst.msk [vmem:[%s3] sm:$0xff] %vm42, %v41
    // Predicated region
    $region18: #{tpu_custom_call.1} parent=1 // pred_check
      _
    $region19: #{tpu_custom_call.1} parent=1 // pred_check_branch
      %45 = sbr.rel (0) target = $region21
    $region20: #{tpu_custom_call.1} parent=1 // pred_region
      _
    $region21: #{tpu_custom_call.1} parent=1 // pred_fallthru
      _
    // Predicated region
    $region22: #{tpu_custom_call.1} parent=1 // pred_check
      _
    $region23: #{tpu_custom_call.1} parent=1 // pred_check_branch
      %47 = sbr.rel (0) target = $region25
    $region24: #{tpu_custom_call.1} parent=1 // pred_region
      _
    $region25: #{tpu_custom_call.1} parent=1 // pred_fallthru
      _
    %48 = vsyncpa [#allocation4], 1

</llo_original>
